<compile_context>
chip_gen: v7x
topology: tpu7x:2x2x1
jax: 0.10.0
libtpu: 0.0.40
codegen_flags: <defaults>
</compile_context>

<pallas_src>
import jax
import jax.numpy as jnp
import numpy as np
from jax.experimental import pallas as pl
from jax.experimental.pallas import tpu as pltpu


def _round_up(n, m):
    return ((n + m - 1) // m) * m


def _molecule_ffn_kernel(x_ref, w1_ref, b1_ref, w2_ref, b2_ref, w3_ref, b3_ref,
                         out_ref):
    """One batch tile (feature-major) of the chemprop FFN + evidential tail.

    x_ref  : (in_dim, tb)   — batch on the lane axis (lane-dense)
    wK_ref : (out_k, in_k)  — transposed Linear weights, VMEM-resident
    bK_ref : (out_k, 1)     — biases as column vectors (f32), broadcast on lanes
    out_ref: (out_w, tb)    — final-layer rows already per-task interleaved
    """
    x = x_ref[...]                                             # (in_dim, tb)

    # Dropout (eval mode) == identity.
    # Linear 1 + ReLU  (h = W1^T @ x + b1)
    h = jnp.dot(w1_ref[...], x, preferred_element_type=jnp.float32)
    h = jnp.maximum(h + b1_ref[...], 0.0)
    # Linear 2 + ReLU
    h = jnp.dot(w2_ref[...], h.astype(w2_ref.dtype),
                preferred_element_type=jnp.float32)
    h = jnp.maximum(h + b2_ref[...], 0.0)
    # Final linear (evidential head); rows already interleaved per task.
    o = jnp.dot(w3_ref[...], h.astype(w3_ref.dtype),
                preferred_element_type=jnp.float32)
    o = o + b3_ref[...]                                        # (out_w, tb) f32

    # Evidential-regression tail.  band = row % 4:
    #   0 -> mean (identity); 1,3 -> softplus + 1e-6; 2 -> softplus + 1e-6 + 1
    min_val = 1e-6
    sp = jax.nn.softplus(o)                                    # one EUP pass, whole tile
    band = jax.lax.broadcasted_iota(jnp.int32, o.shape, 0) % 4
    offset = jnp.where(band == 2, min_val + 1.0, min_val)
    out_ref[...] = jnp.where(band == 0, o, sp + offset).astype(out_ref.dtype)


def pack_params(params, compute_dtype=jnp.float32):
    """One-time parameter preprocessing (outside the hot path).

    - Transposes the Linear weights to (out, in) for the feature-major kernel.
    - Permutes the final layer's rows from blocked [means|lambdas|alphas|betas]
      to per-task interleave, making torch.stack(..., dim=2).view(...) free.
    - Optionally casts the weights to bf16 (streamed-x bandwidth saving);
      biases stay f32 (bias add + tail stays f32).
    """
    w1, b1, w2, b2, w3, b3 = params              # wK: (in_k, out_k), bK: (1, out_k)
    out_w = w3.shape[1]
    tasks = out_w // 4
    # new row j takes old column (j % 4) * tasks + j // 4
    perm = np.arange(out_w).reshape(4, tasks).T.reshape(-1)
    wt1 = jnp.asarray(w1.T, dtype=compute_dtype)                 # (h1, in)
    wt2 = jnp.asarray(w2.T, dtype=compute_dtype)                 # (h2, h1)
    wt3 = jnp.asarray(w3.T[perm, :], dtype=compute_dtype)        # (out_w, h2)
    bc1 = jnp.asarray(b1.reshape(-1, 1), dtype=jnp.float32)      # (h1, 1)
    bc2 = jnp.asarray(b2.reshape(-1, 1), dtype=jnp.float32)      # (h2, 1)
    bc3 = jnp.asarray(b3.reshape(-1, 1)[perm, :], dtype=jnp.float32)
    return (wt1, bc1, wt2, bc2, wt3, bc3)


def molecule_model_forward_fm(xT, packed, *, tile_b=8192):
    """Feature-major hot path.

    xT: (hidden, B) MPN-encoder output with batch on the lane axis.
    Returns (4*tasks, B) with per-task interleaved [mean, lambda, alpha, beta]
    rows (the transpose of the PyTorch module's output).
    """
    wt1, bc1, wt2, bc2, wt3, bc3 = packed
    in_dim, B = xT.shape
    out_w = wt3.shape[0]
    compute_dtype = wt1.dtype
    xT = xT.astype(compute_dtype)

    # Lane tile: multiple of 128, large enough to amortize the ~0.35 us
    # per-grid-step cost, capped at ~ceil(B/2) so the grid keeps >= 2 steps
    # (megacore sharding on v7x).  Raise tile_b (e.g. 16384) on v7x for very
    # large B; lower it if VMEM is tight elsewhere.
    half = _round_up(pl.cdiv(B, 2), 128)
    tb = max(128, min(tile_b, half))
    grid = (pl.cdiv(B, tb),)

    return pl.pallas_call(
        _molecule_ffn_kernel,
        out_shape=jax.ShapeDtypeStruct((out_w, B), jnp.float32),
        grid=grid,
        in_specs=[
            pl.BlockSpec((in_dim, tb), lambda i: (0, i)),   # streamed, lane-dense
            pl.BlockSpec(wt1.shape, lambda i: (0, 0)),      # VMEM-resident weights
            pl.BlockSpec(bc1.shape, lambda i: (0, 0)),
            pl.BlockSpec(wt2.shape, lambda i: (0, 0)),
            pl.BlockSpec(bc2.shape, lambda i: (0, 0)),
            pl.BlockSpec(wt3.shape, lambda i: (0, 0)),
            pl.BlockSpec(bc3.shape, lambda i: (0, 0)),
        ],
        out_specs=pl.BlockSpec((out_w, tb), lambda i: (0, i)),
        compiler_params=pltpu.CompilerParams(
            dimension_semantics=("parallel",),               # megacore on v7x
            vmem_limit_bytes=32 * 1024 * 1024),              # explicit for v5e
    )(xT, wt1, bc1, wt2, bc2, wt3, bc3)


def molecule_model_forward(x, packed, *, tile_b=8192):
    """Batch-major convenience wrapper matching the PyTorch layout.

    x: (B, hidden) encoder output.  Returns (B, 4*tasks) with per-task
    interleaved [mean, lambda, alpha, beta] columns (matches the module).
    """
    # TODO(synk): have the MPN encoder emit (hidden, B) directly and consume the
    # feature-major output downstream to skip these two XLA transposes.
    outT = molecule_model_forward_fm(x.T, packed, tile_b=tile_b)
    return outT.T


def _reference_forward(x, params):
    """Pure-JAX reference matching the PyTorch semantics exactly."""
    w1, b1, w2, b2, w3, b3 = params
    h = jnp.maximum(x @ w1 + b1, 0.0)
    h = jnp.maximum(h @ w2 + b2, 0.0)
    o = h @ w3 + b3
    t = o.shape[1] // 4
    min_val = 1e-6
    means = o[:, 0:t]
    lambdas = jax.nn.softplus(o[:, t:2 * t]) + min_val
    alphas = jax.nn.softplus(o[:, 2 * t:3 * t]) + min_val + 1.0
    betas = jax.nn.softplus(o[:, 3 * t:4 * t]) + min_val
    return jnp.stack((means, lambdas, alphas, betas), axis=2).reshape(o.shape)


def init_params(key, hidden, ffn_hidden, last_hidden, out_size):
    ks = jax.random.split(key, 6)
    scale = 0.1
    w1 = scale * jax.random.normal(ks[0], (hidden, ffn_hidden), jnp.float32)
    b1 = scale * jax.random.normal(ks[1], (1, ffn_hidden), jnp.float32)
    w2 = scale * jax.random.normal(ks[2], (ffn_hidden, last_hidden), jnp.float32)
    b2 = scale * jax.random.normal(ks[3], (1, last_hidden), jnp.float32)
    w3 = scale * jax.random.normal(ks[4], (last_hidden, out_size), jnp.float32)
    b3 = scale * jax.random.normal(ks[5], (1, out_size), jnp.float32)
    return (w1, b1, w2, b2, w3, b3)


if __name__ == "__main__":
    HIDDEN, FFN_HIDDEN, LAST_HIDDEN, TASKS = 32, 32, 32, 2
    OUT_SIZE = 4 * TASKS  # evidential regression: output_size *= 4

    key = jax.random.PRNGKey(0)
    kx, kp, kx2 = jax.random.split(key, 3)
    params = init_params(kp, HIDDEN, FFN_HIDDEN, LAST_HIDDEN, OUT_SIZE)

    # f32 path (bit-close to the PyTorch reference).
    packed_f32 = pack_params(params, compute_dtype=jnp.float32)

    # Small batch (single partial block). x stands in for the MPN encoder output.
    x_small = jax.random.normal(kx, (8, HIDDEN), jnp.float32)
    out_small = jax.block_until_ready(molecule_model_forward(x_small, packed_f32))
    ref_small = jax.block_until_ready(_reference_forward(x_small, params))
    assert out_small.shape == (8, OUT_SIZE)
    assert jnp.allclose(out_small, ref_small, atol=1e-5, rtol=1e-5), \
        "mismatch vs reference (small batch, f32)"

    # Larger ragged batch exercising the pipelined 2-step grid (last block partial).
    x_big = jax.random.normal(kx2, (1040, HIDDEN), jnp.float32)
    out_big = jax.block_until_ready(molecule_model_forward(x_big, packed_f32))
    ref_big = jax.block_until_ready(_reference_forward(x_big, params))
    assert out_big.shape == (1040, OUT_SIZE)
    assert jnp.allclose(out_big, ref_big, atol=1e-5, rtol=1e-5), \
        "mismatch vs reference (large/ragged batch, f32)"

    # Optional bf16 streaming path (halves the HBM-bound x read); f32 accumulate
    # and f32 elementwise tail, so only a small precision delta vs the reference.
    packed_bf16 = pack_params(params, compute_dtype=jnp.bfloat16)
    out_bf16 = jax.block_until_ready(molecule_model_forward(x_big, packed_bf16))
    assert out_bf16.shape == (1040, OUT_SIZE)
    assert jnp.allclose(out_bf16, ref_big, atol=5e-2, rtol=5e-2), \
        "mismatch vs reference (bf16 streaming path)"

    print("KERNEL_OK")
</pallas_src>

<mosaic_0001>
module attributes {stable_mosaic.version = 11 : i64} {
  func.func @_molecule_ffn_kernel(%arg0: i32, %arg1: memref<32x128xf32, #tpu.memory_space<vmem>>, %arg2: memref<32x32xf32, #tpu.memory_space<vmem>>, %arg3: memref<32x1xf32, #tpu.memory_space<vmem>>, %arg4: memref<32x32xf32, #tpu.memory_space<vmem>>, %arg5: memref<32x1xf32, #tpu.memory_space<vmem>>, %arg6: memref<8x32xf32, #tpu.memory_space<vmem>>, %arg7: memref<8x1xf32, #tpu.memory_space<vmem>>, %arg8: memref<8x128xf32, #tpu.memory_space<vmem>>) attributes {dimension_semantics = [#tpu.dimension_semantics<parallel>], iteration_bounds = array<i64: 1>, scalar_prefetch = 0 : i64, scratch_operands = 0 : i64, tpu.core_type = #tpu.core_type<tc>, window_params = [{transform_indices = @transform_0, window_bounds = array<i64: 32, 128>}, {pipeline_mode = #tpu.pipeline_mode<synchronous>, transform_indices = @transform_1, window_bounds = array<i64: 32, 32>}, {pipeline_mode = #tpu.pipeline_mode<synchronous>, transform_indices = @transform_2, window_bounds = array<i64: 32, 1>}, {pipeline_mode = #tpu.pipeline_mode<synchronous>, transform_indices = @transform_3, window_bounds = array<i64: 32, 32>}, {pipeline_mode = #tpu.pipeline_mode<synchronous>, transform_indices = @transform_4, window_bounds = array<i64: 32, 1>}, {pipeline_mode = #tpu.pipeline_mode<synchronous>, transform_indices = @transform_5, window_bounds = array<i64: 8, 32>}, {pipeline_mode = #tpu.pipeline_mode<synchronous>, transform_indices = @transform_6, window_bounds = array<i64: 8, 1>}, {transform_indices = @transform_7, window_bounds = array<i64: 8, 128>}]} {
    %c0 = arith.constant 0 : index
    %c0_0 = arith.constant 0 : index
    %0 = vector.load %arg1[%c0, %c0_0] : memref<32x128xf32, #tpu.memory_space<vmem>>, vector<32x128xf32>
    %c0_1 = arith.constant 0 : index
    %c0_2 = arith.constant 0 : index
    %1 = vector.load %arg2[%c0_1, %c0_2] : memref<32x32xf32, #tpu.memory_space<vmem>>, vector<32x32xf32>
    %cst = arith.constant dense<0.000000e+00> : vector<32x128xf32>
    %2 = tpu.matmul %1, %0, %cst {dimension_numbers = #tpu.dot_dimension_numbers<[1], [0], [0], [1], [0, 0, 1, 1], [], []>} : vector<32x32xf32>, vector<32x128xf32>, vector<32x128xf32> -> vector<32x128xf32>
    %c0_3 = arith.constant 0 : index
    %c0_4 = arith.constant 0 : index
    %3 = vector.load %arg3[%c0_3, %c0_4] : memref<32x1xf32, #tpu.memory_space<vmem>>, vector<32x1xf32>
    %4 = vector.broadcast %3 : vector<32x1xf32> to vector<32x128xf32>
    %5 = arith.addf %2, %4 : vector<32x128xf32>
    %cst_5 = arith.constant 0.000000e+00 : f32
    %6 = vector.broadcast %cst_5 : f32 to vector<32x128xf32>
    %7 = arith.maximumf %5, %6 : vector<32x128xf32>
    %c0_6 = arith.constant 0 : index
    %c0_7 = arith.constant 0 : index
    %8 = vector.load %arg4[%c0_6, %c0_7] : memref<32x32xf32, #tpu.memory_space<vmem>>, vector<32x32xf32>
    %cst_8 = arith.constant dense<0.000000e+00> : vector<32x128xf32>
    %9 = tpu.matmul %8, %7, %cst_8 {dimension_numbers = #tpu.dot_dimension_numbers<[1], [0], [0], [1], [0, 0, 1, 1], [], []>} : vector<32x32xf32>, vector<32x128xf32>, vector<32x128xf32> -> vector<32x128xf32>
    %c0_9 = arith.constant 0 : index
    %c0_10 = arith.constant 0 : index
    %10 = vector.load %arg5[%c0_9, %c0_10] : memref<32x1xf32, #tpu.memory_space<vmem>>, vector<32x1xf32>
    %11 = vector.broadcast %10 : vector<32x1xf32> to vector<32x128xf32>
    %12 = arith.addf %9, %11 : vector<32x128xf32>
    %cst_11 = arith.constant 0.000000e+00 : f32
    %13 = vector.broadcast %cst_11 : f32 to vector<32x128xf32>
    %14 = arith.maximumf %12, %13 : vector<32x128xf32>
    %c0_12 = arith.constant 0 : index
    %c0_13 = arith.constant 0 : index
    %15 = vector.load %arg6[%c0_12, %c0_13] : memref<8x32xf32, #tpu.memory_space<vmem>>, vector<8x32xf32>
    %cst_14 = arith.constant dense<0.000000e+00> : vector<8x128xf32>
    %16 = tpu.matmul %15, %14, %cst_14 {dimension_numbers = #tpu.dot_dimension_numbers<[1], [0], [0], [1], [0, 0, 1, 1], [], []>} : vector<8x32xf32>, vector<32x128xf32>, vector<8x128xf32> -> vector<8x128xf32>
    %c0_15 = arith.constant 0 : index
    %c0_16 = arith.constant 0 : index
    %17 = vector.load %arg7[%c0_15, %c0_16] : memref<8x1xf32, #tpu.memory_space<vmem>>, vector<8x1xf32>
    %18 = vector.broadcast %17 : vector<8x1xf32> to vector<8x128xf32>
    %19 = arith.addf %16, %18 : vector<8x128xf32>
    %cst_17 = arith.constant 0.000000e+00 : f32
    %20 = vector.broadcast %cst_17 : f32 to vector<8x128xf32>
    %21 = arith.maximumf %19, %20 : vector<8x128xf32>
    %22 = vector.broadcast %cst_17 : f32 to vector<8x128xf32>
    %23 = arith.subf %19, %22 : vector<8x128xf32>
    %24 = arith.cmpf one, %23, %23 : vector<8x128xf32>
    %25 = vector.broadcast %cst_17 : f32 to vector<8x128xf32>
    %26 = arith.addf %19, %25 : vector<8x128xf32>
    %27 = math.absf %23 : vector<8x128xf32>
    %cst_18 = arith.constant 0.000000e+00 : f32
    %28 = vector.broadcast %cst_18 : f32 to vector<8x128xf32>
    %29 = arith.subf %28, %27 : vector<8x128xf32>
    %30 = math.exp %29 : vector<8x128xf32>
    %31 = math.log1p %30 : vector<8x128xf32>
    %32 = arith.addf %21, %31 : vector<8x128xf32>
    %33 = arith.select %24, %26, %32 : vector<8x128xi1>, vector<8x128xf32>
    %34 = tpu.iota {dimensions = array<i32: 0>} : vector<8x128xi32>
    %c4_i32 = arith.constant 4 : i32
    %c0_i32 = arith.constant 0 : i32
    %35 = arith.cmpi eq, %c4_i32, %c0_i32 : i32
    %c1_i32 = arith.constant 1 : i32
    %36 = arith.select %35, %c1_i32, %c4_i32 : i32
    %37 = vector.broadcast %36 : i32 to vector<8x128xi32>
    %38 = arith.remsi %34, %37 : vector<8x128xi32>
    %c0_i32_19 = arith.constant 0 : i32
    %39 = vector.broadcast %c0_i32_19 : i32 to vector<8x128xi32>
    %40 = arith.cmpi ne, %38, %39 : vector<8x128xi32>
    %c0_i32_20 = arith.constant 0 : i32
    %41 = vector.broadcast %c0_i32_20 : i32 to vector<8x128xi32>
    %42 = arith.cmpi slt, %38, %41 : vector<8x128xi32>
    %c0_i32_21 = arith.constant 0 : i32
    %43 = arith.cmpi slt, %36, %c0_i32_21 : i32
    %44 = vector.broadcast %43 : i1 to vector<8x128xi1>
    %45 = vector.broadcast %44 : vector<8x128xi1> to vector<8x128xi1>
    %46 = arith.xori %42, %45 : vector<8x128xi1>
    %47 = arith.andi %46, %40 : vector<8x128xi1>
    %48 = vector.broadcast %36 : i32 to vector<8x128xi32>
    %49 = arith.addi %38, %48 : vector<8x128xi32>
    %50 = arith.select %47, %49, %38 : vector<8x128xi1>, vector<8x128xi32>
    %c2_i32 = arith.constant 2 : i32
    %51 = vector.broadcast %c2_i32 : i32 to vector<8x128xi32>
    %52 = arith.cmpi eq, %50, %51 : vector<8x128xi32>
    %cst_22 = arith.constant 1.00000095 : f32
    %cst_23 = arith.constant 9.99999997E-7 : f32
    %53 = vector.broadcast %cst_22 : f32 to vector<8x128xf32>
    %54 = vector.broadcast %cst_23 : f32 to vector<8x128xf32>
    %55 = arith.select %52, %53, %54 : vector<8x128xi1>, vector<8x128xf32>
    %c0_i32_24 = arith.constant 0 : i32
    %56 = vector.broadcast %c0_i32_24 : i32 to vector<8x128xi32>
    %57 = arith.cmpi eq, %50, %56 : vector<8x128xi32>
    %58 = arith.addf %33, %55 : vector<8x128xf32>
    %59 = arith.select %57, %19, %58 : vector<8x128xi1>, vector<8x128xf32>
    %c0_25 = arith.constant 0 : index
    %c0_26 = arith.constant 0 : index
    %60 = vector.load %arg8[%c0_25, %c0_26] : memref<8x128xf32, #tpu.memory_space<vmem>>, vector<8x128xf32>
    tpu.vector_store %arg8[%c0_25, %c0_26], %59 {strides = array<i32>} : memref<8x128xf32, #tpu.memory_space<vmem>>, vector<8x128xf32>,
    return
  }
  func.func @transform_0(%arg0: i32) -> (i32, i32) {
    %c0_i32 = arith.constant 0 : i32
    %c0_i32_0 = arith.constant 0 : i32
    return %c0_i32, %arg0 : i32, i32
  }
  func.func @transform_1(%arg0: i32) -> (i32, i32) {
    %c0_i32 = arith.constant 0 : i32
    %c0_i32_0 = arith.constant 0 : i32
    %c0_i32_1 = arith.constant 0 : i32
    return %c0_i32, %c0_i32_0 : i32, i32
  }
  func.func @transform_2(%arg0: i32) -> (i32, i32) {
    %c0_i32 = arith.constant 0 : i32
    %c0_i32_0 = arith.constant 0 : i32
    %c0_i32_1 = arith.constant 0 : i32
    return %c0_i32, %c0_i32_0 : i32, i32
  }
  func.func @transform_3(%arg0: i32) -> (i32, i32) {
    %c0_i32 = arith.constant 0 : i32
    %c0_i32_0 = arith.constant 0 : i32
    %c0_i32_1 = arith.constant 0 : i32
    return %c0_i32, %c0_i32_0 : i32, i32
  }
  func.func @transform_4(%arg0: i32) -> (i32, i32) {
    %c0_i32 = arith.constant 0 : i32
    %c0_i32_0 = arith.constant 0 : i32
    %c0_i32_1 = arith.constant 0 : i32
    return %c0_i32, %c0_i32_0 : i32, i32
  }
  func.func @transform_5(%arg0: i32) -> (i32, i32) {
    %c0_i32 = arith.constant 0 : i32
    %c0_i32_0 = arith.constant 0 : i32
    %c0_i32_1 = arith.constant 0 : i32
    return %c0_i32, %c0_i32_0 : i32, i32
  }
  func.func @transform_6(%arg0: i32) -> (i32, i32) {
    %c0_i32 = arith.constant 0 : i32
    %c0_i32_0 = arith.constant 0 : i32
    %c0_i32_1 = arith.constant 0 : i32
    return %c0_i32, %c0_i32_0 : i32, i32
  }
  func.func @transform_7(%arg0: i32) -> (i32, i32) {
    %c0_i32 = arith.constant 0 : i32
    %c0_i32_0 = arith.constant 0 : i32
    return %c0_i32, %arg0 : i32, i32
  }
}

</mosaic_0001>

<llo_original>
// kernel: tpu_custom_call.1
$region0: #{tpu_custom_call.1}
  #allocation0 [shape = 'u32[]', space=smem, size = 0x4, offset = 0x4, fixed_abs, tag = 'smem constant byte address 0x4 - core index']
  #allocation1 [shape = 'u32[144,128]{1,0:T(1,128)}', space=vmem, size = 0x12000, scoped, tag = 'internal scratch']
  %s0 = inlined_call_operand.vmem [shape: f32[32,8], index: 0, kind: input, shape index: {}]
  %s1 = inlined_call_operand.vmem [shape: f32[32,32], index: 1, kind: input, shape index: {}]
  %s2 = inlined_call_operand.vmem [shape: f32[32,1], index: 2, kind: input, shape index: {}]
  %s3 = inlined_call_operand.vmem [shape: f32[32,32], index: 3, kind: input, shape index: {}]
  %s4 = inlined_call_operand.vmem [shape: f32[32,1], index: 4, kind: input, shape index: {}]
  %s5 = inlined_call_operand.vmem [shape: f32[8,32], index: 5, kind: input, shape index: {}]
  %s6 = inlined_call_operand.vmem [shape: f32[8,1], index: 6, kind: input, shape index: {}]
  %s7 = inlined_call_operand.hbm [shape: f32[8,8], index: 7, kind: output, shape index: {}]
  %s8 = sld [smem:[#allocation0]]
  $region38: #{tpu_custom_call.1} parent=0
    _
  %s10 = ssub.s32 1, %s8
  %s11 = scalar_select 0, %s10, %s8
  $region1: #{tpu_custom_call.1} parent=0
    #allocation2 [shape = 'u8[4096]{0}', space=vmem, size = 0x1000, scoped, tag = 'output window, operand 0, single buffered']
    #allocation3 [shape = 's32[1]{0}', space=sflag, size = 0x4, scoped, tag = 'scoped memory for tpu_custom_call.1']
    %12 = vsyncpa [#allocation3], 0
    // Predicated region
    $region2: #{tpu_custom_call.1} parent=1 // pred_check
      _
    $region3: #{tpu_custom_call.1} parent=1 // pred_check_branch
      %14 = sbr.rel (0) target = $region5
    $region4: #{tpu_custom_call.1} parent=1 // pred_region
      _
    $region5: #{tpu_custom_call.1} parent=1 // pred_fallthru
      _
    // Predicated region
    $region6: #{tpu_custom_call.1} parent=1 // pred_check
      _
    $region7: #{tpu_custom_call.1} parent=1 // pred_check_branch
      %16 = sbr.rel (0) target = $region9
    $region8: #{tpu_custom_call.1} parent=1 // pred_region
      _
    $region9: #{tpu_custom_call.1} parent=1 // pred_fallthru
      _
    // Predicated region
    $region10: #{tpu_custom_call.1} parent=1 // pred_check
      _
    $region11: #{tpu_custom_call.1} parent=1 // pred_check_branch
      %18 = sbr.rel (0) target = $region13
    $region12: #{tpu_custom_call.1} parent=1 // pred_region
      _
    $region13: #{tpu_custom_call.1} parent=1 // pred_fallthru
      _
    // Predicated region
    $region14: #{tpu_custom_call.1} parent=1 // pred_check
      _
    $region15: #{tpu_custom_call.1} parent=1 // pred_check_branch
      %20 = sbr.rel (0) target = $region17
    $region16: #{tpu_custom_call.1} parent=1 // pred_region
      _
    $region17: #{tpu_custom_call.1} parent=1 // pred_fallthru
      _
    // Predicated region
    $region18: #{tpu_custom_call.1} parent=1 // pred_check
      _
    $region19: #{tpu_custom_call.1} parent=1 // pred_check_branch
      %22 = sbr.rel (0) target = $region21
    $region20: #{tpu_custom_call.1} parent=1 // pred_region
      _
    $region21: #{tpu_custom_call.1} parent=1 // pred_fallthru
      _
    // Predicated region
    $region22: #{tpu_custom_call.1} parent=1 // pred_check
      _
    $region23: #{tpu_custom_call.1} parent=1 // pred_check_branch
      %24 = sbr.rel (0) target = $region25
    $region24: #{tpu_custom_call.1} parent=1 // pred_region
      _
    $region25: #{tpu_custom_call.1} parent=1 // pred_fallthru
      _
    // Predicated region
    $region26: #{tpu_custom_call.1} parent=1 // pred_check
      _
    $region27: #{tpu_custom_call.1} parent=1 // pred_check_branch
      %26 = sbr.rel (0) target = $region29
    $region28: #{tpu_custom_call.1} parent=1 // pred_region
      _
    $region29: #{tpu_custom_call.1} parent=1 // pred_fallthru
      _
    %v27 = vld [vmem:[%s0] sm:$0xff]
    %v28 = vld [vmem:[%s0 + $0x8] sm:$0xff]
    %v29 = vld [vmem:[%s0 + $0x10] sm:$0xff]
    %v30 = vld [vmem:[%s0 + $0x18] sm:$0xff]
    %v31 = vld [vmem:[%s1] sm:$0xff]
    %v32 = vld [vmem:[%s1 + $0x8] sm:$0xff]
    %v33 = vld [vmem:[%s1 + $0x10] sm:$0xff]
    %v34 = vld [vmem:[%s1 + $0x18] sm:$0xff]
    %v35 = vld [vmem:[%s2] sm:$0xff]
    %v36 = vld [vmem:[%s2 + $0x8] sm:$0xff]
    %v37 = vld [vmem:[%s2 + $0x10] sm:$0xff]
    %v38 = vld [vmem:[%s2 + $0x18] sm:$0xff]
    %40 = vset.pattern.permute.xlu0 0
    %41 = vperm.xlu0 %40, %v35
    %v42 = vpop.permute.xlu0 %41
    %45 = vset.pattern.permute.xlu0 0
    %46 = vperm.xlu0 %45, %v36
    %v47 = vpop.permute.xlu0 %46
    %50 = vset.pattern.permute.xlu0 0
    %51 = vperm.xlu0 %50, %v37
    %v52 = vpop.permute.xlu0 %51
    %55 = vset.pattern.permute.xlu0 0
    %56 = vperm.xlu0 %55, %v38
    %v57 = vpop.permute.xlu0 %56
    %vm59 = vcmask 261120
    %v61 = vsel %vm59, %v31, 0
    %v64 = vsel %vm59, %v32, 0
    %v67 = vsel %vm59, %v33, 0
    %v70 = vsel %vm59, %v34, 0
    %72 = vmatprep.subr.mxu0 0.0
    %73 = vmatpush1.msra.mxu0 %v27
    %74 = vmatprep.subr.mxu0 0.0
    %75 = vmatpush1.msra.mxu0 %v28
    %76 = vmatprep.subr.mxu0 0.0
    %77 = vmatpush1.msra.mxu0 %v29
    %78 = vmatprep.subr.mxu0 0.0
    %79 = vmatpush1.msra.mxu0 %v30
    %80 = vmatprep.subr.mxu0 0.0
    %81 = vmatpush1.msra.mxu0 0.0
    %82 = vmatprep.subr.mxu0 0.0
    %83 = vmatpush1.msra.mxu0 0.0
    %84 = vmatprep.subr.mxu0 0.0
    %85 = vmatpush1.msra.mxu0 0.0
    %86 = vmatprep.subr.mxu0 0.0
    %87 = vmatpush1.msra.mxu0 0.0
    %88 = vmatprep.subr.mxu0 0.0
    %89 = vmatpush1.msra.mxu0 0.0
    %90 = vmatprep.subr.mxu0 0.0
    %91 = vmatpush1.msra.mxu0 0.0
    %92 = vmatprep.subr.mxu0 0.0
    %93 = vmatpush1.msra.mxu0 0.0
    %94 = vmatprep.subr.mxu0 0.0
    %95 = vmatpush1.msra.mxu0 0.0
    %96 = vmatprep.subr.mxu0 0.0
    %97 = vmatpush1.msra.mxu0 0.0
    %98 = vmatprep.subr.mxu0 0.0
    %99 = vmatpush1.msra.mxu0 0.0
    %100 = vmatprep.subr.mxu0 0.0
    %101 = vmatpush1.msra.mxu0 0.0
    %102 = vmatprep.subr.mxu0 0.0
    %103 = vmatpush1.msra.mxu0 0.0
    %104 = vmatprep.subr.mxu0 0.0
    %105 = vmatpush1.msra.mxu0 0.0
    %106 = vmatprep.subr.mxu0 0.0
    %107 = vmatpush1.msra.mxu0 0.0
    %108 = vmatprep.subr.mxu0 0.0
    %109 = vmatpush1.msra.mxu0 0.0
    %110 = vmatprep.subr.mxu0 0.0
    %111 = vmatpush1.msra.mxu0 0.0
    %112 = vmatprep.subr.mxu0 0.0
    %113 = vmatpush1.msra.mxu0 0.0
    %114 = vmatprep.subr.mxu0 0.0
    %115 = vmatpush1.msra.mxu0 0.0
    %116 = vmatprep.subr.mxu0 0.0
    %117 = vmatpush1.msra.mxu0 0.0
    %118 = vmatprep.subr.mxu0 0.0
    %119 = vmatpush1.msra.mxu0 0.0
    %120 = vmatprep.subr.mxu0 0.0
    %121 = vmatpush1.msra.mxu0 0.0
    %122 = vmatprep.subr.mxu0 0.0
    %123 = vmatpush1.msra.mxu0 0.0
    %124 = vmatprep.subr.mxu0 0.0
    %125 = vmatpush1.msra.mxu0 0.0
    %126 = vmatprep.subr.mxu0 0.0
    %127 = vmatpush1.msra.mxu0 0.0
    %128 = vmatprep.subr.mxu0 0.0
    %129 = vmatpush1.msra.mxu0 0.0
    %130 = vmatprep.subr.mxu0 0.0
    %131 = vmatpush1.msra.mxu0 0.0
    %132 = vmatprep.subr.mxu0 0.0
    %133 = vmatpush1.msra.mxu0 0.0
    %134 = vmatprep.subr.mxu0 0.0
    %135 = vmatpush1.msra.mxu0 0.0
    %136 = vmatprep.mubr.f32.mxu0 0.0
    %137 = vmatmul.mubr.f32.gmra.mrb[0].mxu0 %v61
    %v138 = vpop.f32.mrb[0].mxu0
    %v139 = vadd.f32 %v42, %v138
    %v140 = vpop.f32.mrb[0].mxu0
    %141 = vmatprep.mubr.f32.mxu0 0.0
    %142 = vmatmul.mubr.f32.gmra.mrb[0].mxu0 %v64
    %v143 = vpop.f32.mrb[0].mxu0
    %v144 = vadd.f32 %v47, %v143
    %v145 = vpop.f32.mrb[0].mxu0
    %146 = vmatprep.mubr.f32.mxu0 0.0
    %147 = vmatmul.mubr.f32.gmra.mrb[0].mxu0 %v67
    %v148 = vpop.f32.mrb[0].mxu0
    %v149 = vadd.f32 %v52, %v148
    %v150 = vpop.f32.mrb[0].mxu0
    %151 = vmatprep.mubr.f32.mxu0 0.0
    %152 = vmatmul.mubr.f32.gmra.mrb[0].mxu0 %v70
    %v153 = vpop.f32.mrb[0].mxu0
    %v154 = vadd.f32 %v57, %v153
    %v155 = vpop.f32.mrb[0].mxu0
    %156 = vdwg.mxu0
    %v157 = vmax.f32 %v139, 0.0
    %v158 = vmax.f32 %v144, 0.0
    %v159 = vmax.f32 %v149, 0.0
    %v160 = vmax.f32 %v154, 0.0
    %v161 = vld [vmem:[%s3] sm:$0xff]
    %v162 = vld [vmem:[%s3 + $0x8] sm:$0xff]
    %v163 = vld [vmem:[%s3 + $0x10] sm:$0xff]
    %v164 = vld [vmem:[%s3 + $0x18] sm:$0xff]
    %v165 = vld [vmem:[%s4] sm:$0xff]
    %v166 = vld [vmem:[%s4 + $0x8] sm:$0xff]
    %v167 = vld [vmem:[%s4 + $0x10] sm:$0xff]
    %v168 = vld [vmem:[%s4 + $0x18] sm:$0xff]
    %170 = vset.pattern.permute.xlu0 0
    %171 = vperm.xlu0 %170, %v165
    %v172 = vpop.permute.xlu0 %171
    %175 = vset.pattern.permute.xlu0 0
    %176 = vperm.xlu0 %175, %v166
    %v177 = vpop.permute.xlu0 %176
    %180 = vset.pattern.permute.xlu0 0
    %181 = vperm.xlu0 %180, %v167
    %v182 = vpop.permute.xlu0 %181
    %185 = vset.pattern.permute.xlu0 0
    %186 = vperm.xlu0 %185, %v168
    %v187 = vpop.permute.xlu0 %186
    %v190 = vsel %vm59, %v161, 0
    %v193 = vsel %vm59, %v162, 0
    %v196 = vsel %vm59, %v163, 0
    %v199 = vsel %vm59, %v164, 0
    %201 = vmatprep.subr.mxu0 0.0
    %202 = vmatpush1.msra.mxu0 %v157
    %203 = vmatprep.subr.mxu0 0.0
    %204 = vmatpush1.msra.mxu0 %v158
    %205 = vmatprep.subr.mxu0 0.0
    %206 = vmatpush1.msra.mxu0 %v159
    %207 = vmatprep.subr.mxu0 0.0
    %208 = vmatpush1.msra.mxu0 %v160
    %209 = vmatprep.subr.mxu0 0.0
    %210 = vmatpush1.msra.mxu0 0.0
    %211 = vmatprep.subr.mxu0 0.0
    %212 = vmatpush1.msra.mxu0 0.0
    %213 = vmatprep.subr.mxu0 0.0
    %214 = vmatpush1.msra.mxu0 0.0
    %215 = vmatprep.subr.mxu0 0.0
    %216 = vmatpush1.msra.mxu0 0.0
    %217 = vmatprep.subr.mxu0 0.0
    %218 = vmatpush1.msra.mxu0 0.0
    %219 = vmatprep.subr.mxu0 0.0
    %220 = vmatpush1.msra.mxu0 0.0
    %221 = vmatprep.subr.mxu0 0.0
    %222 = vmatpush1.msra.mxu0 0.0
    %223 = vmatprep.subr.mxu0 0.0
    %224 = vmatpush1.msra.mxu0 0.0
    %225 = vmatprep.subr.mxu0 0.0
    %226 = vmatpush1.msra.mxu0 0.0
    %227 = vmatprep.subr.mxu0 0.0
    %228 = vmatpush1.msra.mxu0 0.0
    %229 = vmatprep.subr.mxu0 0.0
    %230 = vmatpush1.msra.mxu0 0.0
    %231 = vmatprep.subr.mxu0 0.0
    %232 = vmatpush1.msra.mxu0 0.0
    %233 = vmatprep.subr.mxu0 0.0
    %234 = vmatpush1.msra.mxu0 0.0
    %235 = vmatprep.subr.mxu0 0.0
    %236 = vmatpush1.msra.mxu0 0.0
    %237 = vmatprep.subr.mxu0 0.0
    %238 = vmatpush1.msra.mxu0 0.0
    %239 = vmatprep.subr.mxu0 0.0
    %240 = vmatpush1.msra.mxu0 0.0
    %241 = vmatprep.subr.mxu0 0.0
    %242 = vmatpush1.msra.mxu0 0.0
    %243 = vmatprep.subr.mxu0 0.0
    %244 = vmatpush1.msra.mxu0 0.0
    %245 = vmatprep.subr.mxu0 0.0
    %246 = vmatpush1.msra.mxu0 0.0
    %247 = vmatprep.subr.mxu0 0.0
    %248 = vmatpush1.msra.mxu0 0.0
    %249 = vmatprep.subr.mxu0 0.0
    %250 = vmatpush1.msra.mxu0 0.0
    %251 = vmatprep.subr.mxu0 0.0
    %252 = vmatpush1.msra.mxu0 0.0
    %253 = vmatprep.subr.mxu0 0.0
    %254 = vmatpush1.msra.mxu0 0.0
    %255 = vmatprep.subr.mxu0 0.0
    %256 = vmatpush1.msra.mxu0 0.0
    %257 = vmatprep.subr.mxu0 0.0
    %258 = vmatpush1.msra.mxu0 0.0
    %259 = vmatprep.subr.mxu0 0.0
    %260 = vmatpush1.msra.mxu0 0.0
    %261 = vmatprep.subr.mxu0 0.0
    %262 = vmatpush1.msra.mxu0 0.0
    %263 = vmatprep.subr.mxu0 0.0
    %264 = vmatpush1.msra.mxu0 0.0
    %265 = vmatprep.mubr.f32.mxu0 0.0
    %266 = vmatmul.mubr.f32.gmra.mrb[0].mxu0 %v190
    %v267 = vpop.f32.mrb[0].mxu0
    %v268 = vadd.f32 %v172, %v267
    %v269 = vpop.f32.mrb[0].mxu0
    %270 = vmatprep.mubr.f32.mxu0 0.0
    %271 = vmatmul.mubr.f32.gmra.mrb[0].mxu0 %v193
    %v272 = vpop.f32.mrb[0].mxu0
    %v273 = vadd.f32 %v177, %v272
    %v274 = vpop.f32.mrb[0].mxu0
    %275 = vmatprep.mubr.f32.mxu0 0.0
    %276 = vmatmul.mubr.f32.gmra.mrb[0].mxu0 %v196
    %v277 = vpop.f32.mrb[0].mxu0
    %v278 = vadd.f32 %v182, %v277
    %v279 = vpop.f32.mrb[0].mxu0
    %280 = vmatprep.mubr.f32.mxu0 0.0
    %281 = vmatmul.mubr.f32.gmra.mrb[0].mxu0 %v199
    %v282 = vpop.f32.mrb[0].mxu0
    %v283 = vadd.f32 %v187, %v282
    %v284 = vpop.f32.mrb[0].mxu0
    %285 = vdwg.mxu0
    %v286 = vmax.f32 %v268, 0.0
    %v287 = vmax.f32 %v273, 0.0
    %v288 = vmax.f32 %v278, 0.0
    %v289 = vmax.f32 %v283, 0.0
    %v290 = vld [vmem:[%s5] sm:$0xff]
    %v291 = vld [vmem:[%s6] sm:$0xff]
    %293 = vset.pattern.permute.xlu0 0
    %294 = vperm.xlu0 %293, %v291
    %v295 = vpop.permute.xlu0 %294
    %v298 = vsel %vm59, %v290, 0
    %300 = vmatprep.subr.mxu0 0.0
    %301 = vmatpush1.msra.mxu0 %v286
    %302 = vmatprep.subr.mxu0 0.0
    %303 = vmatpush1.msra.mxu0 %v287
    %304 = vmatprep.subr.mxu0 0.0
    %305 = vmatpush1.msra.mxu0 %v288
    %306 = vmatprep.subr.mxu0 0.0
    %307 = vmatpush1.msra.mxu0 %v289
    %308 = vmatprep.subr.mxu0 0.0
    %309 = vmatpush1.msra.mxu0 0.0
    %310 = vmatprep.subr.mxu0 0.0
    %311 = vmatpush1.msra.mxu0 0.0
    %312 = vmatprep.subr.mxu0 0.0
    %313 = vmatpush1.msra.mxu0 0.0
    %314 = vmatprep.subr.mxu0 0.0
    %315 = vmatpush1.msra.mxu0 0.0
    %316 = vmatprep.subr.mxu0 0.0
    %317 = vmatpush1.msra.mxu0 0.0
    %318 = vmatprep.subr.mxu0 0.0
    %319 = vmatpush1.msra.mxu0 0.0
    %320 = vmatprep.subr.mxu0 0.0
    %321 = vmatpush1.msra.mxu0 0.0
    %322 = vmatprep.subr.mxu0 0.0
    %323 = vmatpush1.msra.mxu0 0.0
    %324 = vmatprep.subr.mxu0 0.0
    %325 = vmatpush1.msra.mxu0 0.0
    %326 = vmatprep.subr.mxu0 0.0
    %327 = vmatpush1.msra.mxu0 0.0
    %328 = vmatprep.subr.mxu0 0.0
    %329 = vmatpush1.msra.mxu0 0.0
    %330 = vmatprep.subr.mxu0 0.0
    %331 = vmatpush1.msra.mxu0 0.0
    %332 = vmatprep.subr.mxu0 0.0
    %333 = vmatpush1.msra.mxu0 0.0
    %334 = vmatprep.subr.mxu0 0.0
    %335 = vmatpush1.msra.mxu0 0.0
    %336 = vmatprep.subr.mxu0 0.0
    %337 = vmatpush1.msra.mxu0 0.0
    %338 = vmatprep.subr.mxu0 0.0
    %339 = vmatpush1.msra.mxu0 0.0
    %340 = vmatprep.subr.mxu0 0.0
    %341 = vmatpush1.msra.mxu0 0.0
    %342 = vmatprep.subr.mxu0 0.0
    %343 = vmatpush1.msra.mxu0 0.0
    %344 = vmatprep.subr.mxu0 0.0
    %345 = vmatpush1.msra.mxu0 0.0
    %346 = vmatprep.subr.mxu0 0.0
    %347 = vmatpush1.msra.mxu0 0.0
    %348 = vmatprep.subr.mxu0 0.0
    %349 = vmatpush1.msra.mxu0 0.0
    %350 = vmatprep.subr.mxu0 0.0
    %351 = vmatpush1.msra.mxu0 0.0
    %352 = vmatprep.subr.mxu0 0.0
    %353 = vmatpush1.msra.mxu0 0.0
    %354 = vmatprep.subr.mxu0 0.0
    %355 = vmatpush1.msra.mxu0 0.0
    %356 = vmatprep.subr.mxu0 0.0
    %357 = vmatpush1.msra.mxu0 0.0
    %358 = vmatprep.subr.mxu0 0.0
    %359 = vmatpush1.msra.mxu0 0.0
    %360 = vmatprep.subr.mxu0 0.0
    %361 = vmatpush1.msra.mxu0 0.0
    %362 = vmatprep.subr.mxu0 0.0
    %363 = vmatpush1.msra.mxu0 0.0
    %364 = vmatprep.mubr.f32.mxu0 0.0
    %365 = vmatmul.mubr.f32.gmra.mrb[0].mxu0 %v298
    %v366 = vpop.f32.mrb[0].mxu0
    %v367 = vadd.f32 %v295, %v366
    %v368 = vpop.f32.mrb[0].mxu0
    %369 = vdwg.mxu0
    %v370 = vmax.f32 %v367, 0.0
    %vm371 = vcmp.ne.f32.partialorder %v367, %v367
    %v372 = vadd.f32 %v367, 0.0
    %v373 = vand.u32 2147483647, %v367
    %v374 = vsub.f32 0.0, %v373
    %v375 = vmul.f32 %v374, 1.442695
    %v376 = vpow.pop %v375
    %v377 = vadd.f32 %v376, 1.0
    %v378 = vlog2.pop %v377
    %v379 = vmul.f32 %v378, 0.6931472
    %v380 = vmul.f32 -0.5, %v376
    %v381 = vadd.f32 %v380, 1.0
    %v382 = vmul.f32 %v381, %v376
    %v383 = vand.u32 2147483647, %v376
    %vm384 = vcmp.lt.f32.partialorder %v383, 0.0004427343
    %v385 = vsel %vm384, %v382, %v379
    %v386 = vadd.f32 %v370, %v385
    %v387 = vsel %vm371, %v372, %v386
    %v388 = vlaneseq
    %v389 = vshrl.u32 %v388, 7
    %vm390 = vcmp.lt.s32.totalorder %v389, 0
    %v391 = vsub.s32 0, %v389
    %v392 = vsel %vm390, %v391, %v389
    %v393 = vshrl.u32 %v392, 2
    %v394 = vand.u32 %v392, 3
    %v395 = vsub.s32 0, %v394
    %v396 = vsel %vm390, %v395, %v394
    %vm397 = vcmp.ne.s32.totalorder %v396, 0
    %vm398 = vcmp.lt.s32.totalorder %v396, 0
    %vm399 = vmand %vm398, %vm397
    %v400 = vadd.s32 %v396, 4
    %v401 = vsel %vm399, %v400, %v396
    %vm402 = vcmp.eq.s32.totalorder %v401, 2
    %v403 = vsel %vm402, 1.000001, 1e-06
    %vm404 = vcmp.eq.s32.totalorder %v401, 0
    %v405 = vadd.f32 %v387, %v403
    %v406 = vsel %vm404, %v367, %v405
    %407 = vst [vmem:[#allocation2] sm:$0xff] %v406
    // Predicated region
    $region30: #{tpu_custom_call.1} parent=1 // pred_check
      _
    $region31: #{tpu_custom_call.1} parent=1 // pred_check_branch
      %409 = sbr.rel (0) target = $region33
    $region32: #{tpu_custom_call.1} parent=1 // pred_region
      %s411 = ssub.s32 128, 128
      %412 = vsyncadd [#allocation3], %s411
      %s414 = sshll.u32 [#allocation2], 4
      %s415 = int_to_ptr.vmem [resolvable:$true] %s414
      %417 = dma.vmem_to_hbm [thread:$0]  %s415, 128, %s7, [#allocation3]
    $region33: #{tpu_custom_call.1} parent=1 // pred_fallthru
      _
    // Predicated region
    $region34: #{tpu_custom_call.1} parent=1 // pred_check
      _
    $region35: #{tpu_custom_call.1} parent=1 // pred_check_branch
      %419 = sbr.rel (0) target = $region37
    $region36: #{tpu_custom_call.1} parent=1 // pred_region
      %420 = dma.done [#allocation3], 128
    $region37: #{tpu_custom_call.1} parent=1 // pred_fallthru
      _
    %421 = vsyncpa [#allocation3], 1

</llo_original>
